<compile_context>
chip_gen: v5e
topology: v5e:2x2
jax: 0.10.0
libtpu: 0.0.40
codegen_flags: <defaults>
</compile_context>

<pallas_src>
import functools

import jax
import jax.numpy as jnp
from jax.experimental import pallas as pl
from jax.experimental.pallas import tpu as pltpu

LN_EPS = 1e-5  # PyTorch nn.LayerNorm default.


def _proj_fcnn_kernel(x_ref, gamma_ref, beta_ref, w_ref, b_ref, o_ref, xn_ref,
                      *, apply_norm):
    # LayerNorm (and the bf16 cast) runs once per M tile, on the first N tile,
    # and is cached in VMEM scratch for the remaining N tiles of this row
    # block.  x's index_map is independent of j, so the x tile itself is also
    # resident (no re-DMA) across the inner N loop.
    @pl.when(pl.program_id(1) == 0)
    def _():
        x = x_ref[...].astype(jnp.float32)
        if apply_norm:
            inv_k = jnp.float32(1.0 / x.shape[-1])
            mean = jnp.sum(x, axis=-1, keepdims=True) * inv_k
            centered = x - mean
            # Centered two-pass variance (matches PyTorch LayerNorm numerics).
            var = jnp.sum(centered * centered, axis=-1, keepdims=True) * inv_k
            xn = centered * jax.lax.rsqrt(var + LN_EPS)
            xn = (xn * gamma_ref[...].astype(jnp.float32)
                  + beta_ref[...].astype(jnp.float32))
        else:
            xn = x
        xn_ref[...] = xn.astype(jnp.bfloat16)

    # MXU matmul: bf16 inputs (W pre-cast at param prep), f32 accumulation.
    y = jnp.dot(xn_ref[...], w_ref[...], preferred_element_type=jnp.float32)
    y = y + b_ref[...].astype(jnp.float32)
    o_ref[...] = jnp.maximum(y, 0.0).astype(o_ref.dtype)


def prepare_projection_params(gamma, beta, weight, bias):
    """One-time parameter preparation, hoisted out of the per-call path.

    gamma/beta: (in_features,)   LayerNorm affine
    weight:     (in_features, out_features)   Linear weight, (in, out) layout
    bias:       (out_features,)
    Returns 2-D affine rows and the weight pre-cast to bf16 (halves its HBM
    traffic and avoids a per-call f32->bf16 XLA pass).
    """
    in_f, out_f = weight.shape
    return (gamma.reshape(1, in_f).astype(jnp.float32),
            beta.reshape(1, in_f).astype(jnp.float32),
            weight.astype(jnp.bfloat16),
            bias.reshape(1, out_f).astype(jnp.float32))


def projection_fcnn(x, gamma2d, beta2d, w_bf16, bias2d, *,
                    norm=True, block_m=512, block_n=256):
    """Fused LayerNorm -> Linear -> ReLU.

    x: (..., in_features); params as returned by prepare_projection_params.
    """
    orig_shape = x.shape
    in_f, out_f = w_bf16.shape
    x2d = x.reshape(-1, in_f)
    M = x2d.shape[0]

    # Tile sizes: full-dim blocks when small (always legal, no padding),
    # otherwise (8,128)-aligned tiles; Pallas masks ragged edge blocks.
    tm = M if M <= block_m else block_m
    tn = out_f if out_f <= block_n else block_n
    m_tiles = pl.cdiv(M, tm)
    n_tiles = pl.cdiv(out_f, tn)

    x_bytes = jnp.dtype(x2d.dtype).itemsize
    out_bytes = jnp.dtype(x.dtype).itemsize

    # VMEM budget from the actual tile footprint (double-buffered in/out plus
    # the LN scratch), with ~2x headroom for Mosaic internals -- keeps margin
    # on v7x (64 MiB physical VMEM per TensorCore) instead of claiming it all.
    footprint = (2 * tm * in_f * x_bytes        # x tiles
                 + 2 * in_f * tn * 2            # W tiles (bf16)
                 + 2 * tm * tn * out_bytes      # out tiles
                 + 4 * in_f * 4 + 2 * tn * 4    # gamma/beta/bias
                 + tm * in_f * 2)               # cached x_norm scratch (bf16)
    vmem_limit = int(min(2 * footprint + (8 << 20), 112 << 20))

    cost = pl.CostEstimate(
        flops=2 * M * in_f * out_f,
        transcendentals=(m_tiles * tm) if norm else 0,  # one rsqrt/row, once per M tile
        bytes_accessed=(M * in_f * x_bytes              # x streamed once
                        + m_tiles * in_f * out_f * 2    # W re-fetched per M tile (bf16)
                        + M * out_f * out_bytes),       # output
    )

    kernel = functools.partial(_proj_fcnn_kernel, apply_norm=norm)

    out = pl.pallas_call(
        kernel,
        out_shape=jax.ShapeDtypeStruct((M, out_f), x.dtype),
        grid_spec=pltpu.PrefetchScalarGridSpec(
            num_scalar_prefetch=0,
            grid=(m_tiles, n_tiles),
            in_specs=[
                # x rows: index_map independent of j -> resident over N loop.
                pl.BlockSpec((tm, in_f), lambda i, j: (i, 0)),
                pl.BlockSpec((1, in_f), lambda i, j: (0, 0)),   # LN gamma
                pl.BlockSpec((1, in_f), lambda i, j: (0, 0)),   # LN beta
                pl.BlockSpec((in_f, tn), lambda i, j: (0, j)),  # W (in,out) bf16
                pl.BlockSpec((1, tn), lambda i, j: (0, j)),     # bias
            ],
            out_specs=pl.BlockSpec((tm, tn), lambda i, j: (i, j)),
            scratch_shapes=[pltpu.VMEM((tm, in_f), jnp.bfloat16)],  # cached x_norm
        ),
        compiler_params=pltpu.CompilerParams(
            # M sharded across TensorCores (v7x); N must stay "arbitrary" so
            # the LN-cache scratch is reused across the inner N loop.
            dimension_semantics=("parallel", "arbitrary"),
            vmem_limit_bytes=vmem_limit,
        ),
        cost_estimate=cost,
    )(x2d, gamma2d, beta2d, w_bf16, bias2d)

    return out.reshape(*orig_shape[:-1], out_f)


def projection_fcnn_ref(x, gamma, beta, weight, bias):
    xf = x.astype(jnp.float32)
    mean = jnp.mean(xf, axis=-1, keepdims=True)
    var = jnp.mean((xf - mean) ** 2, axis=-1, keepdims=True)
    xn = (xf - mean) / jnp.sqrt(var + LN_EPS)
    xn = xn * gamma.reshape(1, -1) + beta.reshape(1, -1)
    y = xn @ weight.astype(jnp.float32) + bias.reshape(1, -1)
    return jnp.maximum(y, 0.0).astype(x.dtype)


if __name__ == "__main__":
    # Small shapes consistent with the module: (batch, seq, in_features)
    # projected to out_features.
    batch, seq, in_features, out_features = 2, 8, 32, 64

    key = jax.random.PRNGKey(0)
    kx, kg, kb, kw, kbias = jax.random.split(key, 5)

    x = jax.random.normal(kx, (batch, seq, in_features), dtype=jnp.float32)

    # PyTorch LN default init is gamma=1, beta=0; perturb to exercise affine.
    gamma = (1.0 + 0.01 * jax.random.normal(kg, (in_features,))).astype(jnp.float32)
    beta = (0.01 * jax.random.normal(kb, (in_features,))).astype(jnp.float32)
    # nn.Linear stores (out, in); we keep the transposed (in, out) layout.
    weight = (jax.random.normal(kw, (in_features, out_features))
              / jnp.sqrt(in_features)).astype(jnp.float32)
    bias = (0.01 * jax.random.normal(kbias, (out_features,))).astype(jnp.float32)

    # One-time parameter prep (hoisted out of the per-call path).
    g2d, b2d, w_bf16, bias2d = prepare_projection_params(gamma, beta, weight, bias)

    out = jax.jit(projection_fcnn)(x, g2d, b2d, w_bf16, bias2d)
    jax.block_until_ready(out)

    ref = projection_fcnn_ref(
        x.reshape(-1, in_features), gamma, beta, weight, bias
    ).reshape(batch, seq, out_features)

    # bf16 MXU inputs (f32 accumulation) -> slightly looser tolerance than f32.
    assert out.shape == ref.shape, "shape mismatch vs reference"
    assert jnp.allclose(out, ref, atol=2e-2, rtol=2e-2), "mismatch vs reference"

    print("KERNEL_OK")
</pallas_src>

<mosaic_0001>
module attributes {stable_mosaic.version = 11 : i64} {
  func.func @_proj_fcnn_kernel(%arg0: i32, %arg1: i32, %arg2: memref<16x32xf32, #tpu.memory_space<vmem>>, %arg3: memref<1x32xf32, #tpu.memory_space<vmem>>, %arg4: memref<1x32xf32, #tpu.memory_space<vmem>>, %arg5: memref<32x64xbf16, #tpu.memory_space<vmem>>, %arg6: memref<1x64xf32, #tpu.memory_space<vmem>>, %arg7: memref<16x64xf32, #tpu.memory_space<vmem>>, %arg8: memref<16x32xbf16, #tpu.memory_space<vmem>>) attributes {dimension_semantics = [#tpu.dimension_semantics<parallel>, #tpu.dimension_semantics<arbitrary>], iteration_bounds = array<i64: 1, 1>, scalar_prefetch = 0 : i64, scratch_operands = 1 : i64, tpu.core_type = #tpu.core_type<tc>, window_params = [{transform_indices = @transform_0, window_bounds = array<i64: 16, 32>}, {pipeline_mode = #tpu.pipeline_mode<synchronous>, transform_indices = @transform_1, window_bounds = array<i64: 1, 32>}, {pipeline_mode = #tpu.pipeline_mode<synchronous>, transform_indices = @transform_2, window_bounds = array<i64: 1, 32>}, {transform_indices = @transform_3, window_bounds = array<i64: 32, 64>}, {transform_indices = @transform_4, window_bounds = array<i64: 1, 64>}, {transform_indices = @transform_5, window_bounds = array<i64: 16, 64>}]} {
    %c0_i32 = arith.constant 0 : i32
    %0 = arith.cmpi eq, %arg1, %c0_i32 : i32
    %1 = arith.extui %0 : i1 to i32
    %c0_i32_0 = arith.constant 0 : i32
    %2 = arith.cmpi ne, %1, %c0_i32_0 : i32
    scf.if %2 {
      %c0_9 = arith.constant 0 : index
      %c0_10 = arith.constant 0 : index
      %12 = vector.load %arg2[%c0_9, %c0_10] : memref<16x32xf32, #tpu.memory_space<vmem>>, vector<16x32xf32>
      %cst_11 = arith.constant dense<0.000000e+00> : vector<16xf32>
      %13 = vector.multi_reduction <add>, %12, %cst_11 [1] : vector<16x32xf32> to vector<16xf32>
      %14 = vector.shape_cast %13 : vector<16xf32> to vector<16x1xf32>
      %cst_12 = arith.constant 3.125000e-02 : f32
      %15 = vector.broadcast %cst_12 : f32 to vector<16x1xf32>
      %16 = arith.mulf %14, %15 : vector<16x1xf32>
      %17 = vector.broadcast %16 : vector<16x1xf32> to vector<16x32xf32>
      %18 = arith.subf %12, %17 : vector<16x32xf32>
      %19 = arith.mulf %18, %18 : vector<16x32xf32>
      %cst_13 = arith.constant dense<0.000000e+00> : vector<16xf32>
      %20 = vector.multi_reduction <add>, %19, %cst_13 [1] : vector<16x32xf32> to vector<16xf32>
      %21 = vector.shape_cast %20 : vector<16xf32> to vector<16x1xf32>
      %cst_14 = arith.constant 3.125000e-02 : f32
      %22 = vector.broadcast %cst_14 : f32 to vector<16x1xf32>
      %23 = arith.mulf %21, %22 : vector<16x1xf32>
      %cst_15 = arith.constant 9.99999974E-6 : f32
      %24 = vector.broadcast %cst_15 : f32 to vector<16x1xf32>
      %25 = arith.addf %23, %24 : vector<16x1xf32>
      %26 = math.rsqrt %25 : vector<16x1xf32>
      %27 = vector.broadcast %26 : vector<16x1xf32> to vector<16x32xf32>
      %28 = arith.mulf %18, %27 : vector<16x32xf32>
      %c0_16 = arith.constant 0 : index
      %c0_17 = arith.constant 0 : index
      %29 = vector.load %arg3[%c0_16, %c0_17] : memref<1x32xf32, #tpu.memory_space<vmem>>, vector<1x32xf32>
      %30 = vector.broadcast %29 : vector<1x32xf32> to vector<16x32xf32>
      %31 = arith.mulf %28, %30 : vector<16x32xf32>
      %c0_18 = arith.constant 0 : index
      %c0_19 = arith.constant 0 : index
      %32 = vector.load %arg4[%c0_18, %c0_19] : memref<1x32xf32, #tpu.memory_space<vmem>>, vector<1x32xf32>
      %33 = vector.broadcast %32 : vector<1x32xf32> to vector<16x32xf32>
      %34 = arith.addf %31, %33 : vector<16x32xf32>
      %35 = arith.truncf %34 : vector<16x32xf32> to vector<16x32xbf16>
      %c0_20 = arith.constant 0 : index
      %c0_21 = arith.constant 0 : index
      %36 = vector.load %arg8[%c0_20, %c0_21] : memref<16x32xbf16, #tpu.memory_space<vmem>>, vector<16x32xbf16>
      tpu.vector_store %arg8[%c0_20, %c0_21], %35 {strides = array<i32>} : memref<16x32xbf16, #tpu.memory_space<vmem>>, vector<16x32xbf16>,
    } else {
    }
    %c0 = arith.constant 0 : index
    %c0_1 = arith.constant 0 : index
    %3 = vector.load %arg8[%c0, %c0_1] : memref<16x32xbf16, #tpu.memory_space<vmem>>, vector<16x32xbf16>
    %c0_2 = arith.constant 0 : index
    %c0_3 = arith.constant 0 : index
    %4 = vector.load %arg5[%c0_2, %c0_3] : memref<32x64xbf16, #tpu.memory_space<vmem>>, vector<32x64xbf16>
    %cst = arith.constant dense<0.000000e+00> : vector<16x64xf32>
    %5 = tpu.matmul %3, %4, %cst {dimension_numbers = #tpu.dot_dimension_numbers<[1], [0], [0], [1], [0, 0, 1, 1], [], []>} : vector<16x32xbf16>, vector<32x64xbf16>, vector<16x64xf32> -> vector<16x64xf32>
    %c0_4 = arith.constant 0 : index
    %c0_5 = arith.constant 0 : index
    %6 = vector.load %arg6[%c0_4, %c0_5] : memref<1x64xf32, #tpu.memory_space<vmem>>, vector<1x64xf32>
    %7 = vector.broadcast %6 : vector<1x64xf32> to vector<16x64xf32>
    %8 = arith.addf %5, %7 : vector<16x64xf32>
    %cst_6 = arith.constant 0.000000e+00 : f32
    %9 = vector.broadcast %cst_6 : f32 to vector<16x64xf32>
    %10 = arith.maximumf %8, %9 : vector<16x64xf32>
    %c0_7 = arith.constant 0 : index
    %c0_8 = arith.constant 0 : index
    %11 = vector.load %arg7[%c0_7, %c0_8] : memref<16x64xf32, #tpu.memory_space<vmem>>, vector<16x64xf32>
    tpu.vector_store %arg7[%c0_7, %c0_8], %10 {strides = array<i32>} : memref<16x64xf32, #tpu.memory_space<vmem>>, vector<16x64xf32>,
    return
  }
  func.func @transform_0(%arg0: i32, %arg1: i32) -> (i32, i32) {
    %c0_i32 = arith.constant 0 : i32
    %c0_i32_0 = arith.constant 0 : i32
    return %arg0, %c0_i32 : i32, i32
  }
  func.func @transform_1(%arg0: i32, %arg1: i32) -> (i32, i32) {
    %c0_i32 = arith.constant 0 : i32
    %c0_i32_0 = arith.constant 0 : i32
    %c0_i32_1 = arith.constant 0 : i32
    return %c0_i32, %c0_i32_0 : i32, i32
  }
  func.func @transform_2(%arg0: i32, %arg1: i32) -> (i32, i32) {
    %c0_i32 = arith.constant 0 : i32
    %c0_i32_0 = arith.constant 0 : i32
    %c0_i32_1 = arith.constant 0 : i32
    return %c0_i32, %c0_i32_0 : i32, i32
  }
  func.func @transform_3(%arg0: i32, %arg1: i32) -> (i32, i32) {
    %c0_i32 = arith.constant 0 : i32
    %c0_i32_0 = arith.constant 0 : i32
    return %c0_i32, %arg1 : i32, i32
  }
  func.func @transform_4(%arg0: i32, %arg1: i32) -> (i32, i32) {
    %c0_i32 = arith.constant 0 : i32
    %c0_i32_0 = arith.constant 0 : i32
    return %c0_i32, %arg1 : i32, i32
  }
  func.func @transform_5(%arg0: i32, %arg1: i32) -> (i32, i32) {
    %c0_i32 = arith.constant 0 : i32
    return %arg0, %arg1 : i32, i32
  }
}

</mosaic_0001>

<llo_original>
// kernel: projection_fcnn.1
$region0: #{projection_fcnn.1}
  #allocation0 [shape = 'u32[]', space=smem, size = 0x4, offset = 0x4, fixed_abs, tag = 'smem constant byte address 0x4 - core index']
  #allocation1 [shape = 'u32[72,128]{1,0:T(1,128)}', space=vmem, size = 0x9000, scoped, tag = 'internal scratch']
  #allocation2 [shape = 'bf16[16,32]{1,0:T(8,128)(2,1)}', space=vmem, size = 0x1000, scoped, tag = 'scratch operand']
  %s0 = inlined_call_operand.hbm [shape: f32[16,32], index: 0, kind: input, shape index: {}]
  %s1 = inlined_call_operand.vmem [shape: f32[1,32], index: 1, kind: input, shape index: {}]
  %s2 = inlined_call_operand.vmem [shape: f32[1,32], index: 2, kind: input, shape index: {}]
  %s3 = inlined_call_operand.hbm [shape: bf16[32,64], index: 3, kind: input, shape index: {}]
  %s4 = inlined_call_operand.vmem [shape: f32[1,64], index: 4, kind: input, shape index: {}]
  %s5 = inlined_call_operand.hbm [shape: f32[16,64], index: 5, kind: output, shape index: {}]
  %s6 = sld [smem:[#allocation0]]
  $region42: #{projection_fcnn.1} parent=0
    _
  %s8 = ssub.s32 1, %s6
  %s9 = scalar_select 0, %s8, %s6
  $region1: #{projection_fcnn.1} parent=0
    #allocation3 [shape = 'u8[8192]{0}', space=vmem, size = 0x2000, scoped, tag = 'input window, operand 0, single buffered']
    #allocation4 [shape = 's32[1]{0}', space=sflag, size = 0x4, scoped, tag = 'scoped memory for projection_fcnn.1']
    #allocation5 [shape = 's32[1]{0}', space=sflag, size = 0x4, scoped, tag = 'scoped memory for projection_fcnn.1']
    #allocation6 [shape = 'u8[8192]{0}', space=vmem, size = 0x2000, scoped, tag = 'input window, operand 3, single buffered']
    #allocation7 [shape = 's32[1]{0}', space=sflag, size = 0x4, scoped, tag = 'scoped memory for projection_fcnn.1']
    #allocation8 [shape = 'u8[8192]{0}', space=vmem, size = 0x2000, scoped, tag = 'output window, operand 0, single buffered']
    %10 = vsyncpa [#allocation4], 0
    %11 = vsyncpa [#allocation7], 0
    %12 = vsyncpa [#allocation5], 0
    // Predicated region
    $region2: #{projection_fcnn.1} parent=1 // pred_check
      _
    $region3: #{projection_fcnn.1} parent=1 // pred_check_branch
      %14 = sbr.rel (0) target = $region5
    $region4: #{projection_fcnn.1} parent=1 // pred_region
      %16 = vsyncadd [#allocation4], 0
      %s17 = sshll.u32 %s0, 4
      %s18 = int_to_ptr.hbm [resolvable:$true] %s17
      %s19 = sshll.u32 [#allocation3], 4
      %s20 = int_to_ptr.vmem [resolvable:$true] %s19
      %25 = dma.hbm_to_vmem [thread:$0]  %s18, 256, %s20, [#allocation4], 128, 128, 8
    $region5: #{projection_fcnn.1} parent=1 // pred_fallthru
      _
    // Predicated region
    $region6: #{projection_fcnn.1} parent=1 // pred_check
      _
    $region7: #{projection_fcnn.1} parent=1 // pred_check_branch
      %27 = sbr.rel (0) target = $region9
    $region8: #{projection_fcnn.1} parent=1 // pred_region
      _
    $region9: #{projection_fcnn.1} parent=1 // pred_fallthru
      _
    // Predicated region
    $region10: #{projection_fcnn.1} parent=1 // pred_check
      _
    $region11: #{projection_fcnn.1} parent=1 // pred_check_branch
      %29 = sbr.rel (0) target = $region13
    $region12: #{projection_fcnn.1} parent=1 // pred_region
      _
    $region13: #{projection_fcnn.1} parent=1 // pred_fallthru
      _
    // Predicated region
    $region14: #{projection_fcnn.1} parent=1 // pred_check
      _
    $region15: #{projection_fcnn.1} parent=1 // pred_check_branch
      %31 = sbr.rel (0) target = $region17
    $region16: #{projection_fcnn.1} parent=1 // pred_region
      %33 = vsyncadd [#allocation7], 0
      %s34 = sshll.u32 %s3, 4
      %s35 = int_to_ptr.hbm [resolvable:$true] %s34
      %s36 = sshll.u32 [#allocation6], 4
      %s37 = int_to_ptr.vmem [resolvable:$true] %s36
      %42 = dma.hbm_to_vmem [thread:$0]  %s35, 256, %s37, [#allocation7], 64, 64, 4
    $region17: #{projection_fcnn.1} parent=1 // pred_fallthru
      _
    // Predicated region
    $region18: #{projection_fcnn.1} parent=1 // pred_check
      _
    $region19: #{projection_fcnn.1} parent=1 // pred_check_branch
      %44 = sbr.rel (0) target = $region21
    $region20: #{projection_fcnn.1} parent=1 // pred_region
      _
    $region21: #{projection_fcnn.1} parent=1 // pred_fallthru
      _
    // Predicated region
    $region22: #{projection_fcnn.1} parent=1 // pred_check
      _
    $region23: #{projection_fcnn.1} parent=1 // pred_check_branch
      %46 = sbr.rel (0) target = $region25
    $region24: #{projection_fcnn.1} parent=1 // pred_region
      %48 = dma.done [#allocation4], 256
    $region25: #{projection_fcnn.1} parent=1 // pred_fallthru
      _
    // Predicated region
    $region26: #{projection_fcnn.1} parent=1 // pred_check
      _
    $region27: #{projection_fcnn.1} parent=1 // pred_check_branch
      %50 = sbr.rel (0) target = $region29
    $region28: #{projection_fcnn.1} parent=1 // pred_region
      %52 = dma.done [#allocation7], 256
    $region29: #{projection_fcnn.1} parent=1 // pred_fallthru
      _
    %p54 = scmp.eq.s32.totalorder 0, 0
    // Predicated region
    $region30: #{projection_fcnn.1} parent=1 // pred_check
      %p55 = pneg %p54
    $region31: #{projection_fcnn.1} parent=1 // pred_check_branch
      %57 = sbr.rel (%p55) target = $region33
    $region32: #{projection_fcnn.1} parent=1 // pred_region
      %v58 = vld [vmem:[#allocation3] sm:$0xff]
      %v59 = vld [vmem:[#allocation3 + $0x8] sm:$0xff]
      %vm60 = vcmask 261120
      %v61 = vsel %vm60, %v58, 0.0
      %62 = vadd.xlane.f32.xlu0 %v61
      %v63 = vpop.xlane.xlu0 %62
      %v64 = vsel %vm60, %v59, 0.0
      %65 = vadd.xlane.f32.xlu0 %v64
      %v66 = vpop.xlane.xlu0 %65
      %v67 = vmul.f32 %v63, 0.03125
      %v68 = vmul.f32 %v66, 0.03125
      %v69 = vsub.f32 %v58, %v67
      %v70 = vsub.f32 %v59, %v68
      %v71 = vmul.f32 %v69, %v69
      %v72 = vmul.f32 %v70, %v70
      %v73 = vsel %vm60, %v71, 0.0
      %74 = vadd.xlane.f32.xlu0 %v73
      %v75 = vpop.xlane.xlu0 %74
      %v76 = vsel %vm60, %v72, 0.0
      %77 = vadd.xlane.f32.xlu0 %v76
      %v78 = vpop.xlane.xlu0 %77
      %v79 = vmul.f32 %v75, 0.03125
      %v80 = vmul.f32 %v78, 0.03125
      %v81 = vadd.f32 %v79, 1e-05
      %v82 = vadd.f32 %v80, 1e-05
      %v83 = vrsqrt.pop %v81
      %v84 = vmul.f32 %v83, %v81
      %v85 = vmul.f32 %v84, %v83
      %v86 = vmul.f32 0.5, %v85
      %v87 = vsub.f32 1.5, %v86
      %v88 = vmul.f32 %v83, %v87
      %vm89 = vweird.f32 %v81
      %vm90 = vweird.f32 %v83
      %vm91 = vmor %vm89, %vm90
      %v92 = vsel %vm91, %v83, %v88
      %v93 = vrsqrt.pop %v82
      %v94 = vmul.f32 %v93, %v82
      %v95 = vmul.f32 %v94, %v93
      %v96 = vmul.f32 0.5, %v95
      %v97 = vsub.f32 1.5, %v96
      %v98 = vmul.f32 %v93, %v97
      %vm99 = vweird.f32 %v82
      %vm100 = vweird.f32 %v93
      %vm101 = vmor %vm99, %vm100
      %v102 = vsel %vm101, %v93, %v98
      %v103 = vmul.f32 %v69, %v92
      %v104 = vmul.f32 %v70, %v102
      %v105 = vld [vmem:[%s1] sm:$0x1]
      %v107 = vperm.slane %v105, 0
      %v109 = vmul.f32 %v103, %v107
      %v110 = vmul.f32 %v104, %v107
      %v111 = vld [vmem:[%s2] sm:$0x1]
      %v113 = vperm.slane %v111, 0
      %v115 = vadd.f32 %v109, %v113
      %v116 = vadd.f32 %v110, %v113
      %v117 = vpack.c.bf16 %v115, %v115
      %v118 = vpack.c.bf16 %v116, %v116
      %vm119 = vcmask 257024
      %120 = vst.msk [vmem:[#allocation2] sm:$0xf] %vm119, %v117
      %121 = vst.msk [vmem:[#allocation2 + $0x4] sm:$0xf] %vm119, %v118
    $region33: #{projection_fcnn.1} parent=1 // pred_fallthru
      _
    %v122 = vld [vmem:[#allocation2] sm:$0xf]
    %v123 = vld [vmem:[#allocation2 + $0x4] sm:$0xf]
    %v124 = vld [vmem:[#allocation6] sm:$0xf]
    %v125 = vld [vmem:[#allocation6 + $0x4] sm:$0xf]
    %v126 = vld [vmem:[#allocation6 + $0x8] sm:$0xf]
    %v127 = vld [vmem:[#allocation6 + $0xc] sm:$0xf]
    %v128 = vld [vmem:[%s4] sm:$0x1]
    %v130 = vperm.slane %v128, 0
    %v134 = vunpack.c.l.b16 %v122
    %v135 = vunpack.c.l.b16 %v123
    %v136 = vpack.c.b16 %v135, %v134
    %v141 = vunpack.c.l.b16 %v124
    %v142 = vunpack.c.l.b16 %v125
    %v143 = vunpack.c.l.b16 %v126
    %v144 = vunpack.c.l.b16 %v127
    %v145 = vpack.c.b16 %v142, %v141
    %v146 = vpack.c.b16 %v144, %v143
    %vm149 = vcmask 261120
    %v151 = vsel %vm149, %v136, 0
    %153 = vmatpush.bf16.msra.mxu0 0
    %154 = vmatpush.bf16.msra.mxu0 0
    %155 = vmatpush.bf16.msra.mxu0 0
    %156 = vmatpush.bf16.msra.mxu0 0
    %157 = vmatpush.bf16.msra.mxu0 0
    %158 = vmatpush.bf16.msra.mxu0 0
    %159 = vmatpush.bf16.msra.mxu0 %v146
    %160 = vmatpush.bf16.msra.mxu0 %v145
    %161 = vmatmul.bf16.gmra.mxu0 %v151
    %v162 = vpop.f32.mrf.mxu0
    %v163 = vadd.f32 %v130, %v162
    %v164 = vpop.f32.mrf.mxu0
    %v165 = vadd.f32 %v130, %v164
    %166 = vdwg.mxu0
    %v167 = vmax.f32 %v163, 0.0
    %v168 = vmax.f32 %v165, 0.0
    %vm169 = vcmask 523264
    %170 = vst.msk [vmem:[#allocation8] sm:$0xff] %vm169, %v167
    %171 = vst.msk [vmem:[#allocation8 + $0x8] sm:$0xff] %vm169, %v168
    // Predicated region
    $region34: #{projection_fcnn.1} parent=1 // pred_check
      _
    $region35: #{projection_fcnn.1} parent=1 // pred_check_branch
      %173 = sbr.rel (0) target = $region37
    $region36: #{projection_fcnn.1} parent=1 // pred_region
      %175 = vsyncadd [#allocation5], 0
      %s176 = sshll.u32 [#allocation8], 4
      %s177 = int_to_ptr.vmem [resolvable:$true] %s176
      %s178 = sshll.u32 %s5, 4
      %s179 = int_to_ptr.hbm [resolvable:$true] %s178
      %184 = dma.vmem_to_hbm [thread:$0]  %s177, 256, %s179, [#allocation5], 128, 128, 8
    $region37: #{projection_fcnn.1} parent=1 // pred_fallthru
      _
    // Predicated region
    $region38: #{projection_fcnn.1} parent=1 // pred_check
      _
    $region39: #{projection_fcnn.1} parent=1 // pred_check_branch
      %186 = sbr.rel (0) target = $region41
    $region40: #{projection_fcnn.1} parent=1 // pred_region
      %188 = dma.done [#allocation5], 256
    $region41: #{projection_fcnn.1} parent=1 // pred_fallthru
      _
    %189 = vsyncpa [#allocation4], 1
    %190 = vsyncpa [#allocation7], 1
    %191 = vsyncpa [#allocation5], 1

</llo_original>
